<compile_context>
chip_gen: v5e
topology: v5e:2x2
jax: 0.10.0
libtpu: 0.0.40
codegen_flags: <defaults>
</compile_context>

<pallas_src>
import functools
import math

import jax
import jax.numpy as jnp
from jax import lax
from jax.experimental import pallas as pl
from jax.experimental.pallas import tpu as pltpu


def _policy_grad_kernel(x_ref, w_cat_ref, b_cat_ref, y_ref, *, n_actions):
    x = x_ref[...]                                      # [bt, F]
    # One fused MXU matmul for both heads, contracting on F:
    #   x [bt, F]  x  W_cat [2A, F]  ->  y [bt, 2A]   (f32 accumulation)
    y = lax.dot_general(
        x, w_cat_ref[...],
        dimension_numbers=(((1,), (1,)), ((), ())),
        preferred_element_type=jnp.float32,
    )
    y = y + b_cat_ref[...]                              # [1, 2A] broadcasts (f32)
    # exp() only on the std half (columns >= n_actions); keeps a single fused
    # [bt, 2A] store instead of two lane-sparse [bt, A] stores.
    col = lax.broadcasted_iota(jnp.int32, y.shape, dimension=1)
    y = jnp.where(col >= n_actions, jnp.exp(y), y)
    y_ref[...] = y.astype(y_ref.dtype)


def fuse_policy_params(w_mu, b_mu, w_std, b_std):
    """Call ONCE at parameter-init time (not per forward).

    w_*: [A, F] (PyTorch nn.Linear layout), b_*: [A].
    Returns W_cat [2A, F] and b_cat [1, 2A] in float32.
    """
    w_cat = jnp.concatenate(
        [w_mu.astype(jnp.float32), w_std.astype(jnp.float32)], axis=0)   # [2A, F]
    b_cat = jnp.concatenate(
        [b_mu.astype(jnp.float32), b_std.astype(jnp.float32)]).reshape(1, -1)
    return w_cat, b_cat


def _choose_batch_tile(B, F, two_a, in_itemsize, out_itemsize,
                       budget_bytes=24 * 1024 * 1024):
    """VMEM-budget-aware batch tile (multiple of 8), portable to v7x (64 MiB)."""
    # Double-buffered x block + double-buffered fused-output block, per row.
    per_row = 2 * F * in_itemsize + 2 * two_a * out_itemsize
    bt = budget_bytes // max(per_row, 1)
    bt = max(8, min(bt, 32768))          # small-F cap: fewer grid steps, ~4 MiB x block
    bt = (bt // 8) * 8
    if bt >= B:
        # Batch fits in one tile -> prefer >= 2 grid steps so v7x's second
        # TensorCore gets work and the x DMA can pipeline; tiny batches stay
        # as a single (possibly padded) tile.
        half = (((B + 1) // 2) + 7) // 8 * 8
        if B > 8 and half >= 8:
            bt = half
        else:
            bt = ((B + 7) // 8) * 8
    return bt


def policy_gradient_forward(x, w_cat, b_cat, n_actions):
    """x: [B, F]; w_cat: [2A, F]; b_cat: [1, 2A]. Returns (mu, theta), each [B, A]."""
    B, F = x.shape
    two_a = w_cat.shape[0]
    assert two_a == 2 * n_actions and w_cat.shape[1] == F
    assert b_cat.shape == (1, two_a)

    in_itemsize = jnp.dtype(x.dtype).itemsize
    out_itemsize = jnp.dtype(x.dtype).itemsize
    bt = _choose_batch_tile(B, F, two_a, in_itemsize, out_itemsize)
    grid = (pl.cdiv(B, bt),)

    # Actual per-call VMEM footprint (+ headroom), clamped to v7x-safe range.
    vmem_bytes = (2 * bt * F * in_itemsize            # x, double-buffered
                  + 2 * bt * two_a * out_itemsize     # fused output, double-buffered
                  + two_a * F * 4 + two_a * 4)        # resident weights + bias
    vmem_limit = int(min(max(int(vmem_bytes * 1.5) + (2 << 20), 32 << 20), 64 << 20))

    kernel = functools.partial(_policy_grad_kernel, n_actions=n_actions)

    cost = pl.CostEstimate(
        flops=2 * B * two_a * F,
        transcendentals=B * n_actions,
        bytes_accessed=in_itemsize * B * F + 4 * two_a * F
                       + out_itemsize * B * two_a,
    )

    y = pl.pallas_call(
        kernel,
        out_shape=jax.ShapeDtypeStruct((B, two_a), x.dtype),
        grid=grid,
        in_specs=[
            pl.BlockSpec((bt, F), lambda i: (i, 0)),        # x: tiled over batch
            pl.BlockSpec((two_a, F), lambda i: (0, 0)),     # W_cat: grid-invariant
            pl.BlockSpec((1, two_a), lambda i: (0, 0)),     # b_cat: grid-invariant
        ],
        out_specs=pl.BlockSpec((bt, two_a), lambda i: (i, 0)),
        compiler_params=pltpu.CompilerParams(
            dimension_semantics=("parallel",),              # 2x TCs on v7x
            vmem_limit_bytes=vmem_limit),
        cost_estimate=cost,
    )(x, w_cat, b_cat)

    # Cheap wrapper split of the fused [B, 2A] slab.
    mu = y[:, :n_actions]
    theta = y[:, n_actions:]
    return mu, theta


def _xavier_uniform(key, shape):
    fan_out, fan_in = shape  # nn.Linear weight is [out, in]
    bound = math.sqrt(6.0 / (fan_in + fan_out))
    return jax.random.uniform(key, shape, jnp.float32, -bound, bound)


def _linear_bias(key, fan_in, n_out):
    bound = 1.0 / math.sqrt(fan_in)
    return jax.random.uniform(key, (n_out,), jnp.float32, -bound, bound)


if __name__ == "__main__":
    n_features = 32
    n_actions = 8

    key = jax.random.PRNGKey(0)
    k_x, k_wmu, k_bmu, k_wstd, k_bstd, k_x2 = jax.random.split(key, 6)

    w_mu = _xavier_uniform(k_wmu, (n_actions, n_features))
    b_mu = _linear_bias(k_bmu, n_features, n_actions)
    w_std = _xavier_uniform(k_wstd, (n_actions, n_features))
    b_std = _linear_bias(k_bstd, n_features, n_actions)

    # Init-time fusion (done once, outside the forward path).
    w_cat, b_cat = fuse_policy_params(w_mu, b_mu, w_std, b_std)
    jax.block_until_ready((w_cat, b_cat))

    ok = True
    # Small single-tile batch and a multi-tile batch (exercises the cdiv grid
    # with a partial last tile; OOB stores are clipped so HBM stays correct).
    for batch, kx in ((8, k_x), (24, k_x2)):
        x = jax.random.normal(kx, (batch, n_features), jnp.float32)
        mu, theta = policy_gradient_forward(x, w_cat, b_cat, n_actions)
        jax.block_until_ready((mu, theta))

        # Reference check in plain JAX (matches PyTorch forward semantics).
        mu_ref = x @ w_mu.T + b_mu
        theta_ref = jnp.exp(x @ w_std.T + b_std)
        ok &= bool(jnp.allclose(mu, mu_ref, atol=1e-5, rtol=1e-5))
        ok &= bool(jnp.allclose(theta, theta_ref, atol=1e-5, rtol=1e-5))

    assert ok
    print("KERNEL_OK")
</pallas_src>

<mosaic_0001>
module attributes {stable_mosaic.version = 11 : i64} {
  func.func @_policy_grad_kernel(%arg0: i32, %arg1: memref<8x32xf32, #tpu.memory_space<vmem>>, %arg2: memref<16x32xf32, #tpu.memory_space<vmem>>, %arg3: memref<1x16xf32, #tpu.memory_space<vmem>>, %arg4: memref<8x16xf32, #tpu.memory_space<vmem>>) attributes {dimension_semantics = [#tpu.dimension_semantics<parallel>], iteration_bounds = array<i64: 1>, scalar_prefetch = 0 : i64, scratch_operands = 0 : i64, tpu.core_type = #tpu.core_type<tc>, window_params = [{transform_indices = @transform_0, window_bounds = array<i64: 8, 32>}, {pipeline_mode = #tpu.pipeline_mode<synchronous>, transform_indices = @transform_1, window_bounds = array<i64: 16, 32>}, {pipeline_mode = #tpu.pipeline_mode<synchronous>, transform_indices = @transform_2, window_bounds = array<i64: 1, 16>}, {transform_indices = @transform_3, window_bounds = array<i64: 8, 16>}]} {
    %c0 = arith.constant 0 : index
    %c0_0 = arith.constant 0 : index
    %0 = vector.load %arg1[%c0, %c0_0] : memref<8x32xf32, #tpu.memory_space<vmem>>, vector<8x32xf32>
    %c0_1 = arith.constant 0 : index
    %c0_2 = arith.constant 0 : index
    %1 = vector.load %arg2[%c0_1, %c0_2] : memref<16x32xf32, #tpu.memory_space<vmem>>, vector<16x32xf32>
    %cst = arith.constant dense<0.000000e+00> : vector<8x16xf32>
    %2 = tpu.matmul %0, %1, %cst {dimension_numbers = #tpu.dot_dimension_numbers<[1], [1], [0], [0], [0, 0, 1, 0], [], []>} : vector<8x32xf32>, vector<16x32xf32>, vector<8x16xf32> -> vector<8x16xf32>
    %c0_3 = arith.constant 0 : index
    %c0_4 = arith.constant 0 : index
    %3 = vector.load %arg3[%c0_3, %c0_4] : memref<1x16xf32, #tpu.memory_space<vmem>>, vector<1x16xf32>
    %4 = vector.broadcast %3 : vector<1x16xf32> to vector<8x16xf32>
    %5 = arith.addf %2, %4 : vector<8x16xf32>
    %6 = tpu.iota {dimensions = array<i32: 1>} : vector<8x16xi32>
    %c8_i32 = arith.constant 8 : i32
    %7 = vector.broadcast %c8_i32 : i32 to vector<8x16xi32>
    %8 = arith.cmpi sge, %6, %7 : vector<8x16xi32>
    %9 = math.exp %5 : vector<8x16xf32>
    %10 = arith.select %8, %9, %5 : vector<8x16xi1>, vector<8x16xf32>
    %c0_5 = arith.constant 0 : index
    %c0_6 = arith.constant 0 : index
    %11 = vector.load %arg4[%c0_5, %c0_6] : memref<8x16xf32, #tpu.memory_space<vmem>>, vector<8x16xf32>
    tpu.vector_store %arg4[%c0_5, %c0_6], %10 {strides = array<i32>} : memref<8x16xf32, #tpu.memory_space<vmem>>, vector<8x16xf32>,
    return
  }
  func.func @transform_0(%arg0: i32) -> (i32, i32) {
    %c0_i32 = arith.constant 0 : i32
    %c0_i32_0 = arith.constant 0 : i32
    return %arg0, %c0_i32 : i32, i32
  }
  func.func @transform_1(%arg0: i32) -> (i32, i32) {
    %c0_i32 = arith.constant 0 : i32
    %c0_i32_0 = arith.constant 0 : i32
    %c0_i32_1 = arith.constant 0 : i32
    return %c0_i32, %c0_i32_0 : i32, i32
  }
  func.func @transform_2(%arg0: i32) -> (i32, i32) {
    %c0_i32 = arith.constant 0 : i32
    %c0_i32_0 = arith.constant 0 : i32
    %c0_i32_1 = arith.constant 0 : i32
    return %c0_i32, %c0_i32_0 : i32, i32
  }
  func.func @transform_3(%arg0: i32) -> (i32, i32) {
    %c0_i32 = arith.constant 0 : i32
    %c0_i32_0 = arith.constant 0 : i32
    return %arg0, %c0_i32 : i32, i32
  }
}

</mosaic_0001>

<llo_original>
// kernel: tpu_custom_call.1
$region0: #{tpu_custom_call.1}
  #allocation0 [shape = 'u32[]', space=smem, size = 0x4, offset = 0x4, fixed_abs, tag = 'smem constant byte address 0x4 - core index']
  #allocation1 [shape = 'u32[72,128]{1,0:T(1,128)}', space=vmem, size = 0x9000, scoped, tag = 'internal scratch']
  %s0 = inlined_call_operand.hbm [shape: f32[8,32], index: 0, kind: input, shape index: {}]
  %s1 = inlined_call_operand.hbm [shape: f32[16,32], index: 1, kind: input, shape index: {}]
  %s2 = inlined_call_operand.vmem [shape: f32[1,16], index: 2, kind: input, shape index: {}]
  %s3 = inlined_call_operand.hbm [shape: f32[8,16], index: 3, kind: output, shape index: {}]
  %s4 = sld [smem:[#allocation0]]
  $region30: #{tpu_custom_call.1} parent=0
    _
  %s6 = ssub.s32 1, %s4
  %s7 = scalar_select 0, %s6, %s4
  $region1: #{tpu_custom_call.1} parent=0
    #allocation2 [shape = 'u8[4096]{0}', space=vmem, size = 0x1000, scoped, tag = 'input window, operand 0, single buffered']
    #allocation3 [shape = 's32[1]{0}', space=sflag, size = 0x4, scoped, tag = 'scoped memory for tpu_custom_call.1']
    #allocation4 [shape = 's32[1]{0}', space=sflag, size = 0x4, scoped, tag = 'scoped memory for tpu_custom_call.1']
    #allocation5 [shape = 'u8[8192]{0}', space=vmem, size = 0x2000, scoped, tag = 'input window, operand 1, single buffered']
    #allocation6 [shape = 's32[1]{0}', space=sflag, size = 0x4, scoped, tag = 'scoped memory for tpu_custom_call.1']
    #allocation7 [shape = 'u8[4096]{0}', space=vmem, size = 0x1000, scoped, tag = 'output window, operand 0, single buffered']
    %8 = vsyncpa [#allocation3], 0
    %9 = vsyncpa [#allocation6], 0
    %10 = vsyncpa [#allocation4], 0
    // Predicated region
    $region2: #{tpu_custom_call.1} parent=1 // pred_check
      _
    $region3: #{tpu_custom_call.1} parent=1 // pred_check_branch
      %12 = sbr.rel (0) target = $region5
    $region4: #{tpu_custom_call.1} parent=1 // pred_region
      %14 = vsyncadd [#allocation3], 0
      %s16 = sshll.u32 %s0, 4
      %s17 = int_to_ptr.hbm [resolvable:$true] %s16
      %s18 = sshll.u32 [#allocation2], 4
      %s19 = int_to_ptr.vmem [resolvable:$true] %s18
      %21 = dma.hbm_to_vmem [thread:$0]  %s17, 128, %s19, [#allocation3]
    $region5: #{tpu_custom_call.1} parent=1 // pred_fallthru
      _
    // Predicated region
    $region6: #{tpu_custom_call.1} parent=1 // pred_check
      _
    $region7: #{tpu_custom_call.1} parent=1 // pred_check_branch
      %23 = sbr.rel (0) target = $region9
    $region8: #{tpu_custom_call.1} parent=1 // pred_region
      %25 = vsyncadd [#allocation6], 0
      %s26 = sshll.u32 %s1, 4
      %s27 = int_to_ptr.hbm [resolvable:$true] %s26
      %s28 = sshll.u32 [#allocation5], 4
      %s29 = int_to_ptr.vmem [resolvable:$true] %s28
      %34 = dma.hbm_to_vmem [thread:$0]  %s27, 256, %s29, [#allocation6], 128, 128, 8
    $region9: #{tpu_custom_call.1} parent=1 // pred_fallthru
      _
    // Predicated region
    $region10: #{tpu_custom_call.1} parent=1 // pred_check
      _
    $region11: #{tpu_custom_call.1} parent=1 // pred_check_branch
      %36 = sbr.rel (0) target = $region13
    $region12: #{tpu_custom_call.1} parent=1 // pred_region
      _
    $region13: #{tpu_custom_call.1} parent=1 // pred_fallthru
      _
    // Predicated region
    $region14: #{tpu_custom_call.1} parent=1 // pred_check
      _
    $region15: #{tpu_custom_call.1} parent=1 // pred_check_branch
      %38 = sbr.rel (0) target = $region17
    $region16: #{tpu_custom_call.1} parent=1 // pred_region
      %40 = dma.done [#allocation3], 128
    $region17: #{tpu_custom_call.1} parent=1 // pred_fallthru
      _
    // Predicated region
    $region18: #{tpu_custom_call.1} parent=1 // pred_check
      _
    $region19: #{tpu_custom_call.1} parent=1 // pred_check_branch
      %42 = sbr.rel (0) target = $region21
    $region20: #{tpu_custom_call.1} parent=1 // pred_region
      %44 = dma.done [#allocation6], 256
    $region21: #{tpu_custom_call.1} parent=1 // pred_fallthru
      _
    %v45 = vld [vmem:[#allocation2] sm:$0xff]
    %v46 = vld [vmem:[#allocation5] sm:$0xff]
    %v47 = vld [vmem:[#allocation5 + $0x8] sm:$0xff]
    %v48 = vld [vmem:[%s2] sm:$0x1]
    %v50 = vperm.slane %v48, 0
    %vm52 = vcmask 261120
    %v54 = vsel %vm52, %v45, 0
    %v57 = vsel %vm52, %v46, 0
    %v60 = vsel %vm52, %v47, 0
    %62 = vmatpush.xpose.msra.mxu0 0.0
    %63 = vmatpush.xpose.msra.mxu0 0.0
    %64 = vmatpush.xpose.msra.mxu0 0.0
    %65 = vmatpush.xpose.msra.mxu0 0.0
    %66 = vmatpush.xpose.msra.mxu0 0.0
    %67 = vmatpush.xpose.msra.mxu0 0.0
    %68 = vmatpush.xpose.msra.mxu0 0.0
    %69 = vmatpush.xpose.msra.mxu0 0.0
    %70 = vmatpush.xpose.msra.mxu0 0.0
    %71 = vmatpush.xpose.msra.mxu0 0.0
    %72 = vmatpush.xpose.msra.mxu0 0.0
    %73 = vmatpush.xpose.msra.mxu0 0.0
    %74 = vmatpush.xpose.msra.mxu0 0.0
    %75 = vmatpush.xpose.msra.mxu0 0.0
    %76 = vmatpush.xpose.msra.mxu0 %v60
    %77 = vmatpush.xpose.msra.mxu0 %v57
    %78 = vmatmul.f32.gmra.mxu0 %v54
    %v79 = vpop.f32.mrf.mxu0
    %v80 = vadd.f32 %v50, %v79
    %81 = vdwg.mxu0
    %v82 = vlaneseq
    %v83 = vand.u32 %v82, 127
    %vm84 = vcmp.ge.s32.totalorder %v83, 8
    %v85 = vmul.f32 %v80, 1.442695
    %v86 = vpow.pop %v85
    %v87 = vsel %vm84, %v86, %v80
    %vm88 = vcmask 130048
    %89 = vst.msk [vmem:[#allocation7] sm:$0xff] %vm88, %v87
    // Predicated region
    $region22: #{tpu_custom_call.1} parent=1 // pred_check
      _
    $region23: #{tpu_custom_call.1} parent=1 // pred_check_branch
      %91 = sbr.rel (0) target = $region25
    $region24: #{tpu_custom_call.1} parent=1 // pred_region
      %93 = vsyncadd [#allocation4], 0
      %s95 = sshll.u32 [#allocation7], 4
      %s96 = int_to_ptr.vmem [resolvable:$true] %s95
      %s97 = sshll.u32 %s3, 4
      %s98 = int_to_ptr.hbm [resolvable:$true] %s97
      %100 = dma.vmem_to_hbm [thread:$0]  %s96, 128, %s98, [#allocation4]
    $region25: #{tpu_custom_call.1} parent=1 // pred_fallthru
      _
    // Predicated region
    $region26: #{tpu_custom_call.1} parent=1 // pred_check
      _
    $region27: #{tpu_custom_call.1} parent=1 // pred_check_branch
      %102 = sbr.rel (0) target = $region29
    $region28: #{tpu_custom_call.1} parent=1 // pred_region
      %104 = dma.done [#allocation4], 128
    $region29: #{tpu_custom_call.1} parent=1 // pred_fallthru
      _
    %105 = vsyncpa [#allocation3], 1
    %106 = vsyncpa [#allocation6], 1
    %107 = vsyncpa [#allocation4], 1

</llo_original>
